<compile_context>
chip_gen: v6e
topology: v6e:2x2x1
jax: 0.10.0
libtpu: 0.0.40
codegen_flags: <defaults>
</compile_context>

<pallas_src>
import functools

import jax
import jax.numpy as jnp
from jax.experimental import pallas as pl
from jax.experimental.pallas import tpu as pltpu


HIDDEN = 256
IN_FEATURES = 3 * 3
OUT_FEATURES = 1
DEFAULT_TILE_B = 256  # rows per grid step; sized well within v7x's 64 MiB VMEM


def _round_up(n, m):
    return ((n + m - 1) // m) * m


def _prelu(x, alpha):
    # PReLU with a single shared learnable parameter per layer (PyTorch default).
    return jnp.where(x > 0, x, alpha * x)


def critic_kernel(
    alpha_ref,                         # SMEM (3,) f32: PReLU alphas (one per layer)
    x_ref,                             # (TILE_B, 9)   f32
    w1_ref, b1_ref,                    # (9, 256) bf16, (1, 256) f32
    w2_ref, b2_ref,                    # (256, 256) bf16, (1, 256) f32
    w3_ref, b3_ref,                    # (256, 256) bf16, (1, 256) f32
    w4_ref, b4_ref,                    # (256, 1) bf16, (1, 1) f32
    out_ref,                           # (TILE_B, 1) f32
):
    # bf16 operands -> MXU at native rate, f32 accumulation.
    x = x_ref[...].astype(jnp.bfloat16)

    h = jnp.dot(x, w1_ref[...], preferred_element_type=jnp.float32) + b1_ref[...]
    h = _prelu(h, alpha_ref[0])

    h = jnp.dot(h.astype(jnp.bfloat16), w2_ref[...],
                preferred_element_type=jnp.float32) + b2_ref[...]
    h = _prelu(h, alpha_ref[1])

    h = jnp.dot(h.astype(jnp.bfloat16), w3_ref[...],
                preferred_element_type=jnp.float32) + b3_ref[...]
    h = _prelu(h, alpha_ref[2])

    out = jnp.dot(h.astype(jnp.bfloat16), w4_ref[...],
                  preferred_element_type=jnp.float32) + b4_ref[...]
    # (TILE_B, 1) store is masked/single-lane; byte count is tiny so left as-is.
    out_ref[...] = out.astype(out_ref.dtype)


@functools.partial(jax.jit, static_argnames=("tile_b",))
def critic_forward(state, params, tile_b=DEFAULT_TILE_B):
    """state: (B, 3, 3) float32  ->  (B, 1) float32."""
    B = state.shape[0]
    x = state.reshape(B, -1).astype(jnp.float32)  # (B, 9), same as torch .reshape(B, -1)

    (w1, b1), (w2, b2), (w3, b3), (w4, b4), alphas = params

    # Pick a batch tile: at least 8 (sublane), at most tile_b; pad B up to a
    # multiple of the tile so every block is full (padded rows are zeros and
    # sliced off at the end).
    tb = min(tile_b, _round_up(B, 8))
    b_padded = _round_up(B, tb)
    if b_padded != B:
        x = jnp.pad(x, ((0, b_padded - B), (0, 0)))

    grid = (b_padded // tb,)

    const = lambda i: (0, 0)  # weights/biases: same block every step -> stay resident

    out = pl.pallas_call(
        critic_kernel,
        out_shape=jax.ShapeDtypeStruct((b_padded, OUT_FEATURES), jnp.float32),
        grid=grid,
        in_specs=[
            pl.BlockSpec(memory_space=pltpu.MemorySpace.SMEM),        # alphas
            pl.BlockSpec((tb, IN_FEATURES), lambda i: (i, 0)),        # x tile
            pl.BlockSpec((IN_FEATURES, HIDDEN), const),               # w1
            pl.BlockSpec((1, HIDDEN), const),                         # b1
            pl.BlockSpec((HIDDEN, HIDDEN), const),                    # w2
            pl.BlockSpec((1, HIDDEN), const),                         # b2
            pl.BlockSpec((HIDDEN, HIDDEN), const),                    # w3
            pl.BlockSpec((1, HIDDEN), const),                         # b3
            pl.BlockSpec((HIDDEN, OUT_FEATURES), const),              # w4
            pl.BlockSpec((1, OUT_FEATURES), const),                   # b4
        ],
        out_specs=pl.BlockSpec((tb, OUT_FEATURES), lambda i: (i, 0)),
        compiler_params=pltpu.CompilerParams(
            dimension_semantics=("parallel",),   # 2 TCs on v7x; no-op on v5e/v6e
            vmem_limit_bytes=32 << 20,
        ),
    )(
        alphas,
        x,
        w1, b1.reshape(1, -1),
        w2, b2.reshape(1, -1),
        w3, b3.reshape(1, -1),
        w4, b4.reshape(1, -1),
    )
    return out[:B]


def xavier_normal(key, fan_in, fan_out, dtype=jnp.float32):
    # torch.nn.init.xavier_normal_: std = gain * sqrt(2 / (fan_in + fan_out)), gain=1
    std = (2.0 / (fan_in + fan_out)) ** 0.5
    return std * jax.random.normal(key, (fan_in, fan_out), dtype=dtype)


def init_critic_params(key):
    k1, k2, k3, k4 = jax.random.split(key, 4)
    # Weights stored as (in, out) so x @ W == PyTorch x @ W.T; bf16 to halve the
    # weight-DMA floor and hit native MXU rate. Biases f32, PReLU alpha = 0.25.
    w1 = xavier_normal(k1, IN_FEATURES, HIDDEN).astype(jnp.bfloat16)
    b1 = jnp.zeros((HIDDEN,), jnp.float32)
    w2 = xavier_normal(k2, HIDDEN, HIDDEN).astype(jnp.bfloat16)
    b2 = jnp.zeros((HIDDEN,), jnp.float32)
    w3 = xavier_normal(k3, HIDDEN, HIDDEN).astype(jnp.bfloat16)
    b3 = jnp.zeros((HIDDEN,), jnp.float32)
    w4 = xavier_normal(k4, HIDDEN, OUT_FEATURES).astype(jnp.bfloat16)
    b4 = jnp.zeros((OUT_FEATURES,), jnp.float32)
    alphas = jnp.full((3,), 0.25, jnp.float32)   # independent alpha slot per layer
    return ((w1, b1), (w2, b2), (w3, b3), (w4, b4), alphas)


def critic_reference(state, params):
    """Pure-JAX reference using the same bf16-operand / f32-accumulate recipe."""
    x = state.reshape(state.shape[0], -1).astype(jnp.float32)
    (w1, b1), (w2, b2), (w3, b3), (w4, b4), alphas = params

    def layer(h, w, b, a):
        y = jnp.dot(h.astype(jnp.bfloat16), w, preferred_element_type=jnp.float32) + b
        return jnp.where(y > 0, y, a * y)

    h = layer(x, w1, b1, alphas[0])
    h = layer(h, w2, b2, alphas[1])
    h = layer(h, w3, b3, alphas[2])
    return jnp.dot(h.astype(jnp.bfloat16), w4, preferred_element_type=jnp.float32) + b4


if __name__ == "__main__":
    key = jax.random.PRNGKey(0)
    k_param, k_state1, k_state2 = jax.random.split(key, 3)

    params = init_critic_params(k_param)

    # Small batch (single grid step, tb = 8).
    B = 8
    state = jax.random.normal(k_state1, (B, 3, 3), dtype=jnp.float32)
    out = jax.block_until_ready(critic_forward(state, params))
    ref = critic_reference(state, params)
    assert out.shape == (B, 1), out.shape
    assert jnp.allclose(out, ref, atol=1e-2, rtol=1e-2), (
        f"max abs err {jnp.max(jnp.abs(out - ref))}"
    )

    # Larger batch: exercises the batch grid (tile 256, padding 300 -> 512, 2 steps).
    B2 = 300
    state2 = jax.random.normal(k_state2, (B2, 3, 3), dtype=jnp.float32)
    out2 = jax.block_until_ready(critic_forward(state2, params))
    ref2 = critic_reference(state2, params)
    assert out2.shape == (B2, 1), out2.shape
    assert jnp.allclose(out2, ref2, atol=1e-2, rtol=1e-2), (
        f"max abs err {jnp.max(jnp.abs(out2 - ref2))}"
    )

    print("KERNEL_OK")
</pallas_src>

<mosaic_0001>
module attributes {stable_mosaic.version = 11 : i64} {
  func.func @critic_kernel(%arg0: i32, %arg1: memref<3xf32, #tpu.memory_space<smem>>, %arg2: memref<8x9xf32, #tpu.memory_space<vmem>>, %arg3: memref<9x256xbf16, #tpu.memory_space<vmem>>, %arg4: memref<1x256xf32, #tpu.memory_space<vmem>>, %arg5: memref<256x256xbf16, #tpu.memory_space<vmem>>, %arg6: memref<1x256xf32, #tpu.memory_space<vmem>>, %arg7: memref<256x256xbf16, #tpu.memory_space<vmem>>, %arg8: memref<1x256xf32, #tpu.memory_space<vmem>>, %arg9: memref<256x1xbf16, #tpu.memory_space<vmem>>, %arg10: memref<1x1xf32, #tpu.memory_space<vmem>>, %arg11: memref<8x1xf32, #tpu.memory_space<vmem>>) attributes {dimension_semantics = [#tpu.dimension_semantics<parallel>], iteration_bounds = array<i64: 1>, scalar_prefetch = 0 : i64, scratch_operands = 0 : i64, tpu.core_type = #tpu.core_type<tc>, window_params = [{transform_indices = @transform_0, window_bounds = array<i64: 3>}, {transform_indices = @transform_1, window_bounds = array<i64: 8, 9>}, {pipeline_mode = #tpu.pipeline_mode<synchronous>, transform_indices = @transform_2, window_bounds = array<i64: 9, 256>}, {pipeline_mode = #tpu.pipeline_mode<synchronous>, transform_indices = @transform_3, window_bounds = array<i64: 1, 256>}, {pipeline_mode = #tpu.pipeline_mode<synchronous>, transform_indices = @transform_4, window_bounds = array<i64: 256, 256>}, {pipeline_mode = #tpu.pipeline_mode<synchronous>, transform_indices = @transform_5, window_bounds = array<i64: 1, 256>}, {pipeline_mode = #tpu.pipeline_mode<synchronous>, transform_indices = @transform_6, window_bounds = array<i64: 256, 256>}, {pipeline_mode = #tpu.pipeline_mode<synchronous>, transform_indices = @transform_7, window_bounds = array<i64: 1, 256>}, {pipeline_mode = #tpu.pipeline_mode<synchronous>, transform_indices = @transform_8, window_bounds = array<i64: 256, 1>}, {pipeline_mode = #tpu.pipeline_mode<synchronous>, transform_indices = @transform_9, window_bounds = array<i64: 1, 1>}, {transform_indices = @transform_10, window_bounds = array<i64: 8, 1>}]} {
    %c0 = arith.constant 0 : index
    %c0_0 = arith.constant 0 : index
    %0 = vector.load %arg2[%c0, %c0_0] : memref<8x9xf32, #tpu.memory_space<vmem>>, vector<8x9xf32>
    %1 = arith.truncf %0 : vector<8x9xf32> to vector<8x9xbf16>
    %c0_1 = arith.constant 0 : index
    %c0_2 = arith.constant 0 : index
    %2 = vector.load %arg3[%c0_1, %c0_2] : memref<9x256xbf16, #tpu.memory_space<vmem>>, vector<9x256xbf16>
    %cst = arith.constant dense<0.000000e+00> : vector<8x256xf32>
    %3 = tpu.matmul %1, %2, %cst {dimension_numbers = #tpu.dot_dimension_numbers<[1], [0], [0], [1], [0, 0, 1, 1], [], []>} : vector<8x9xbf16>, vector<9x256xbf16>, vector<8x256xf32> -> vector<8x256xf32>
    %c0_3 = arith.constant 0 : index
    %c0_4 = arith.constant 0 : index
    %4 = vector.load %arg4[%c0_3, %c0_4] : memref<1x256xf32, #tpu.memory_space<vmem>>, vector<1x256xf32>
    %5 = vector.broadcast %4 : vector<1x256xf32> to vector<8x256xf32>
    %6 = arith.addf %3, %5 : vector<8x256xf32>
    %c0_5 = arith.constant 0 : index
    %7 = memref.load %arg1[%c0_5] : memref<3xf32, #tpu.memory_space<smem>>
    %cst_6 = arith.constant 0.000000e+00 : f32
    %8 = vector.broadcast %cst_6 : f32 to vector<8x256xf32>
    %9 = arith.cmpf ogt, %6, %8 : vector<8x256xf32>
    %10 = vector.broadcast %7 : f32 to vector<8x256xf32>
    %11 = arith.mulf %10, %6 : vector<8x256xf32>
    %12 = arith.select %9, %6, %11 : vector<8x256xi1>, vector<8x256xf32>
    %13 = arith.truncf %12 : vector<8x256xf32> to vector<8x256xbf16>
    %c0_7 = arith.constant 0 : index
    %c0_8 = arith.constant 0 : index
    %14 = vector.load %arg5[%c0_7, %c0_8] : memref<256x256xbf16, #tpu.memory_space<vmem>>, vector<256x256xbf16>
    %cst_9 = arith.constant dense<0.000000e+00> : vector<8x256xf32>
    %15 = tpu.matmul %13, %14, %cst_9 {dimension_numbers = #tpu.dot_dimension_numbers<[1], [0], [0], [1], [0, 0, 1, 1], [], []>} : vector<8x256xbf16>, vector<256x256xbf16>, vector<8x256xf32> -> vector<8x256xf32>
    %c0_10 = arith.constant 0 : index
    %c0_11 = arith.constant 0 : index
    %16 = vector.load %arg6[%c0_10, %c0_11] : memref<1x256xf32, #tpu.memory_space<vmem>>, vector<1x256xf32>
    %17 = vector.broadcast %16 : vector<1x256xf32> to vector<8x256xf32>
    %18 = arith.addf %15, %17 : vector<8x256xf32>
    %c1 = arith.constant 1 : index
    %19 = memref.load %arg1[%c1] : memref<3xf32, #tpu.memory_space<smem>>
    %cst_12 = arith.constant 0.000000e+00 : f32
    %20 = vector.broadcast %cst_12 : f32 to vector<8x256xf32>
    %21 = arith.cmpf ogt, %18, %20 : vector<8x256xf32>
    %22 = vector.broadcast %19 : f32 to vector<8x256xf32>
    %23 = arith.mulf %22, %18 : vector<8x256xf32>
    %24 = arith.select %21, %18, %23 : vector<8x256xi1>, vector<8x256xf32>
    %25 = arith.truncf %24 : vector<8x256xf32> to vector<8x256xbf16>
    %c0_13 = arith.constant 0 : index
    %c0_14 = arith.constant 0 : index
    %26 = vector.load %arg7[%c0_13, %c0_14] : memref<256x256xbf16, #tpu.memory_space<vmem>>, vector<256x256xbf16>
    %cst_15 = arith.constant dense<0.000000e+00> : vector<8x256xf32>
    %27 = tpu.matmul %25, %26, %cst_15 {dimension_numbers = #tpu.dot_dimension_numbers<[1], [0], [0], [1], [0, 0, 1, 1], [], []>} : vector<8x256xbf16>, vector<256x256xbf16>, vector<8x256xf32> -> vector<8x256xf32>
    %c0_16 = arith.constant 0 : index
    %c0_17 = arith.constant 0 : index
    %28 = vector.load %arg8[%c0_16, %c0_17] : memref<1x256xf32, #tpu.memory_space<vmem>>, vector<1x256xf32>
    %29 = vector.broadcast %28 : vector<1x256xf32> to vector<8x256xf32>
    %30 = arith.addf %27, %29 : vector<8x256xf32>
    %c2 = arith.constant 2 : index
    %31 = memref.load %arg1[%c2] : memref<3xf32, #tpu.memory_space<smem>>
    %cst_18 = arith.constant 0.000000e+00 : f32
    %32 = vector.broadcast %cst_18 : f32 to vector<8x256xf32>
    %33 = arith.cmpf ogt, %30, %32 : vector<8x256xf32>
    %34 = vector.broadcast %31 : f32 to vector<8x256xf32>
    %35 = arith.mulf %34, %30 : vector<8x256xf32>
    %36 = arith.select %33, %30, %35 : vector<8x256xi1>, vector<8x256xf32>
    %37 = arith.truncf %36 : vector<8x256xf32> to vector<8x256xbf16>
    %c0_19 = arith.constant 0 : index
    %c0_20 = arith.constant 0 : index
    %38 = vector.load %arg9[%c0_19, %c0_20] : memref<256x1xbf16, #tpu.memory_space<vmem>>, vector<256x1xbf16>
    %cst_21 = arith.constant dense<0.000000e+00> : vector<8x1xf32>
    %39 = tpu.matmul %37, %38, %cst_21 {dimension_numbers = #tpu.dot_dimension_numbers<[1], [0], [0], [1], [0, 0, 1, 1], [], []>} : vector<8x256xbf16>, vector<256x1xbf16>, vector<8x1xf32> -> vector<8x1xf32>
    %c0_22 = arith.constant 0 : index
    %c0_23 = arith.constant 0 : index
    %40 = vector.load %arg10[%c0_22, %c0_23] : memref<1x1xf32, #tpu.memory_space<vmem>>, vector<1x1xf32>
    %41 = vector.broadcast %40 : vector<1x1xf32> to vector<8x1xf32>
    %42 = arith.addf %39, %41 : vector<8x1xf32>
    %c0_24 = arith.constant 0 : index
    %c0_25 = arith.constant 0 : index
    %43 = vector.load %arg11[%c0_24, %c0_25] : memref<8x1xf32, #tpu.memory_space<vmem>>, vector<8x1xf32>
    tpu.vector_store %arg11[%c0_24, %c0_25], %42 {strides = array<i32>} : memref<8x1xf32, #tpu.memory_space<vmem>>, vector<8x1xf32>,
    return
  }
  func.func @transform_0(%arg0: i32) -> i32 {
    %c0_i32 = arith.constant 0 : i32
    %c0_i32_0 = arith.constant 0 : i32
    return %c0_i32 : i32
  }
  func.func @transform_1(%arg0: i32) -> (i32, i32) {
    %c0_i32 = arith.constant 0 : i32
    %c0_i32_0 = arith.constant 0 : i32
    return %arg0, %c0_i32 : i32, i32
  }
  func.func @transform_2(%arg0: i32) -> (i32, i32) {
    %c0_i32 = arith.constant 0 : i32
    %c0_i32_0 = arith.constant 0 : i32
    %c0_i32_1 = arith.constant 0 : i32
    return %c0_i32, %c0_i32_0 : i32, i32
  }
  func.func @transform_3(%arg0: i32) -> (i32, i32) {
    %c0_i32 = arith.constant 0 : i32
    %c0_i32_0 = arith.constant 0 : i32
    %c0_i32_1 = arith.constant 0 : i32
    return %c0_i32, %c0_i32_0 : i32, i32
  }
  func.func @transform_4(%arg0: i32) -> (i32, i32) {
    %c0_i32 = arith.constant 0 : i32
    %c0_i32_0 = arith.constant 0 : i32
    %c0_i32_1 = arith.constant 0 : i32
    return %c0_i32, %c0_i32_0 : i32, i32
  }
  func.func @transform_5(%arg0: i32) -> (i32, i32) {
    %c0_i32 = arith.constant 0 : i32
    %c0_i32_0 = arith.constant 0 : i32
    %c0_i32_1 = arith.constant 0 : i32
    return %c0_i32, %c0_i32_0 : i32, i32
  }
  func.func @transform_6(%arg0: i32) -> (i32, i32) {
    %c0_i32 = arith.constant 0 : i32
    %c0_i32_0 = arith.constant 0 : i32
    %c0_i32_1 = arith.constant 0 : i32
    return %c0_i32, %c0_i32_0 : i32, i32
  }
  func.func @transform_7(%arg0: i32) -> (i32, i32) {
    %c0_i32 = arith.constant 0 : i32
    %c0_i32_0 = arith.constant 0 : i32
    %c0_i32_1 = arith.constant 0 : i32
    return %c0_i32, %c0_i32_0 : i32, i32
  }
  func.func @transform_8(%arg0: i32) -> (i32, i32) {
    %c0_i32 = arith.constant 0 : i32
    %c0_i32_0 = arith.constant 0 : i32
    %c0_i32_1 = arith.constant 0 : i32
    return %c0_i32, %c0_i32_0 : i32, i32
  }
  func.func @transform_9(%arg0: i32) -> (i32, i32) {
    %c0_i32 = arith.constant 0 : i32
    %c0_i32_0 = arith.constant 0 : i32
    %c0_i32_1 = arith.constant 0 : i32
    return %c0_i32, %c0_i32_0 : i32, i32
  }
  func.func @transform_10(%arg0: i32) -> (i32, i32) {
    %c0_i32 = arith.constant 0 : i32
    %c0_i32_0 = arith.constant 0 : i32
    return %arg0, %c0_i32 : i32, i32
  }
}

</mosaic_0001>

<llo_original>
// kernel: critic_forward.1
$region0: #{critic_forward.1}
  #allocation0 [shape = 'u32[]', space=smem, size = 0x4, offset = 0x4, fixed_abs, tag = 'smem constant byte address 0x4 - core index']
  #allocation1 [shape = 'u32[144,128]{1,0:T(1,128)}', space=vmem, size = 0x12000, scoped, tag = 'internal scratch']
  #allocation2 [shape = 'f32[1,1]{1,0:T(1,128)S(1)}', space=vmem, size = 0x200, scoped, tag = 'scoped memory for critic_forward.1']
  %s0 = inlined_call_operand.vmem [shape: f32[3], index: 0, kind: input, shape index: {}]
  %s1 = inlined_call_operand.vmem [shape: f32[8,9], index: 1, kind: input, shape index: {}]
  %s2 = inlined_call_operand.vmem [shape: bf16[9,256], index: 2, kind: input, shape index: {}]
  %s3 = inlined_call_operand.vmem [shape: f32[1,256], index: 3, kind: input, shape index: {}]
  %s4 = inlined_call_operand.hbm [shape: bf16[256,256], index: 4, kind: input, shape index: {}]
  %s5 = inlined_call_operand.vmem [shape: f32[1,256], index: 5, kind: input, shape index: {}]
  %s6 = inlined_call_operand.hbm [shape: bf16[256,256], index: 6, kind: input, shape index: {}]
  %s7 = inlined_call_operand.vmem [shape: f32[1,256], index: 7, kind: input, shape index: {}]
  %s8 = inlined_call_operand.vmem [shape: bf16[256,1], index: 8, kind: input, shape index: {}]
  %s9 = inlined_call_operand.<no memory space> [shape: f32[1,1], index: 9, kind: input, shape index: {}]
  %s10 = inlined_call_operand.vmem [shape: f32[8,1], index: 10, kind: output, shape index: {}]
  %s11 = sld [smem:[#allocation0]]
  $region62: #{critic_forward.1} parent=0
    _
  %s13 = ssub.s32 1, %s11
  %s14 = scalar_select 0, %s13, %s11
  %v15 = vstv %s9
  %16 = vst [vmem:[#allocation2] sm:$0x1] %v15
  $region1: #{critic_forward.1} parent=0
    #allocation3 [shape = 'u8[512]{0}', space=smem, size = 0x200, scoped, tag = 'input window, operand 0, single buffered']
    #allocation4 [shape = 's32[1]{0}', space=sflag, size = 0x4, scoped, tag = 'scoped memory for critic_forward.1']
    #allocation5 [shape = 's32[1]{0}', space=sflag, size = 0x4, scoped, tag = 'scoped memory for critic_forward.1']
    #allocation6 [shape = 'u8[131072]{0}', space=vmem, size = 0x20000, scoped, tag = 'input window, operand 4, single buffered']
    #allocation7 [shape = 'u8[131072]{0}', space=vmem, size = 0x20000, scoped, tag = 'input window, operand 6, single buffered']
    #allocation8 [shape = 's32[1]{0}', space=sflag, size = 0x4, scoped, tag = 'scoped memory for critic_forward.1']
    %17 = vsyncpa [#allocation5], 0
    %18 = vsyncpa [#allocation4], 0
    %19 = vsyncpa [#allocation8], 0
    // Predicated region
    $region2: #{critic_forward.1} parent=1 // pred_check
      _
    $region3: #{critic_forward.1} parent=1 // pred_check_branch
      %21 = sbr.rel (0) target = $region5
    $region4: #{critic_forward.1} parent=1 // pred_region
      %s23 = ssub.s32 16, 16
      %24 = vsyncadd [#allocation5], %s23
      %s26 = sshll.u32 %s0, 4
      %s27 = int_to_ptr.vmem [resolvable:$true] %s26
      %29 = dma.vmem_to_smem %s27, 16, [#allocation3], [#allocation5]
    $region5: #{critic_forward.1} parent=1 // pred_fallthru
      _
    // Predicated region
    $region6: #{critic_forward.1} parent=1 // pred_check
      _
    $region7: #{critic_forward.1} parent=1 // pred_check_branch
      %31 = sbr.rel (0) target = $region9
    $region8: #{critic_forward.1} parent=1 // pred_region
      _
    $region9: #{critic_forward.1} parent=1 // pred_fallthru
      _
    // Predicated region
    $region10: #{critic_forward.1} parent=1 // pred_check
      _
    $region11: #{critic_forward.1} parent=1 // pred_check_branch
      %33 = sbr.rel (0) target = $region13
    $region12: #{critic_forward.1} parent=1 // pred_region
      _
    $region13: #{critic_forward.1} parent=1 // pred_fallthru
      _
    // Predicated region
    $region14: #{critic_forward.1} parent=1 // pred_check
      _
    $region15: #{critic_forward.1} parent=1 // pred_check_branch
      %35 = sbr.rel (0) target = $region17
    $region16: #{critic_forward.1} parent=1 // pred_region
      _
    $region17: #{critic_forward.1} parent=1 // pred_fallthru
      _
    // Predicated region
    $region18: #{critic_forward.1} parent=1 // pred_check
      _
    $region19: #{critic_forward.1} parent=1 // pred_check_branch
      %37 = sbr.rel (0) target = $region21
    $region20: #{critic_forward.1} parent=1 // pred_region
      %s39 = ssub.s32 4096, 4096
      %40 = vsyncadd [#allocation4], %s39
      %s41 = sshll.u32 [#allocation6], 4
      %s42 = int_to_ptr.vmem [resolvable:$true] %s41
      %47 = dma.hbm_to_vmem [thread:$0]  %s4, 4096, %s42, [#allocation4], 128, 128, 8
    $region21: #{critic_forward.1} parent=1 // pred_fallthru
      _
    // Predicated region
    $region22: #{critic_forward.1} parent=1 // pred_check
      _
    $region23: #{critic_forward.1} parent=1 // pred_check_branch
      %49 = sbr.rel (0) target = $region25
    $region24: #{critic_forward.1} parent=1 // pred_region
      _
    $region25: #{critic_forward.1} parent=1 // pred_fallthru
      _
    // Predicated region
    $region26: #{critic_forward.1} parent=1 // pred_check
      _
    $region27: #{critic_forward.1} parent=1 // pred_check_branch
      %51 = sbr.rel (0) target = $region29
    $region28: #{critic_forward.1} parent=1 // pred_region
      %s53 = ssub.s32 4096, 4096
      %54 = vsyncadd [#allocation8], %s53
      %s55 = sshll.u32 [#allocation7], 4
      %s56 = int_to_ptr.vmem [resolvable:$true] %s55
      %61 = dma.hbm_to_vmem [thread:$0]  %s6, 4096, %s56, [#allocation8], 128, 128, 8
    $region29: #{critic_forward.1} parent=1 // pred_fallthru
      _
    // Predicated region
    $region30: #{critic_forward.1} parent=1 // pred_check
      _
    $region31: #{critic_forward.1} parent=1 // pred_check_branch
      %63 = sbr.rel (0) target = $region33
    $region32: #{critic_forward.1} parent=1 // pred_region
      _
    $region33: #{critic_forward.1} parent=1 // pred_fallthru
      _
    // Predicated region
    $region34: #{critic_forward.1} parent=1 // pred_check
      _
    $region35: #{critic_forward.1} parent=1 // pred_check_branch
      %65 = sbr.rel (0) target = $region37
    $region36: #{critic_forward.1} parent=1 // pred_region
      _
    $region37: #{critic_forward.1} parent=1 // pred_fallthru
      _
    // Predicated region
    $region38: #{critic_forward.1} parent=1 // pred_check
      _
    $region39: #{critic_forward.1} parent=1 // pred_check_branch
      %67 = sbr.rel (0) target = $region41
    $region40: #{critic_forward.1} parent=1 // pred_region
      _
    $region41: #{critic_forward.1} parent=1 // pred_fallthru
      _
    // Predicated region
    $region42: #{critic_forward.1} parent=1 // pred_check
      _
    $region43: #{critic_forward.1} parent=1 // pred_check_branch
      %69 = sbr.rel (0) target = $region45
    $region44: #{critic_forward.1} parent=1 // pred_region
      %70 = dma.done [#allocation5], 16
    $region45: #{critic_forward.1} parent=1 // pred_fallthru
      _
    // Predicated region
    $region46: #{critic_forward.1} parent=1 // pred_check
      _
    $region47: #{critic_forward.1} parent=1 // pred_check_branch
      %72 = sbr.rel (0) target = $region49
    $region48: #{critic_forward.1} parent=1 // pred_region
      %73 = dma.done [#allocation4], 4096
    $region49: #{critic_forward.1} parent=1 // pred_fallthru
      _
    // Predicated region
    $region50: #{critic_forward.1} parent=1 // pred_check
      _
    $region51: #{critic_forward.1} parent=1 // pred_check_branch
      %75 = sbr.rel (0) target = $region53
    $region52: #{critic_forward.1} parent=1 // pred_region
      %76 = dma.done [#allocation8], 4096
    $region53: #{critic_forward.1} parent=1 // pred_fallthru
      _
    %77 = sfence
    %v79 = vld [vmem:[%s1] sm:$0xff]
    %v80 = vpack.c.bf16 %v79, %v79
    %v81 = vld [vmem:[%s2] sm:$0xff]
    %v82 = vld [vmem:[%s2 + $0x8] sm:$0x11]
    %v83 = vld [vmem:[%s3] sm:$0x3]
    %v85 = vlaneseq
    %v86 = vshrl.u32 %v85, 7
    %v87 = vsub.s32 0, %v86
    %v88 = vrot.slane %v83, %v87
    %v89 = vlaneseq
    %v90 = vshrl.u32 %v89, 7
    %v91 = vsub.s32 1, %v90
    %v92 = vrot.slane %v83, %v91
    %v97 = vunpack.c.l.b16 %v81
    %v98 = vunpack.c.h.b16 %v81
    %v99 = vunpack.c.l.b16 %v82
    %v100 = vunpack.c.h.b16 %v82
    %v101 = vpack.c.b16 %v99, %v97
    %v102 = vpack.c.b16 %v100, %v98
    %vm103 = vcmask 72704
    %v105 = vsel %vm103, %v80, 0
    %vm107 = vcmask 1043456
    %vm108 = vcmask 1044480
    %v109 = vsel %vm107, 4294967295, 65535
    %v110 = vsel %vm108, %v109, 0
    %v112 = vand.u32 %v101, %v110
    %v115 = vand.u32 %v102, %v110
    %117 = vmatprep.subr.bf16.mxu0 0
    %118 = vmatpush1.bf16.msra.mxu0 0
    %119 = vmatprep.subr.bf16.mxu0 0
    %120 = vmatpush1.bf16.msra.mxu0 0
    %121 = vmatprep.subr.bf16.mxu0 0
    %122 = vmatpush1.bf16.msra.mxu0 0
    %123 = vmatprep.subr.bf16.mxu0 0
    %124 = vmatpush1.bf16.msra.mxu0 0
    %125 = vmatprep.subr.bf16.mxu0 0
    %126 = vmatpush1.bf16.msra.mxu0 0
    %127 = vmatprep.subr.bf16.mxu0 0
    %128 = vmatpush1.bf16.msra.mxu0 0
    %129 = vmatprep.subr.bf16.mxu0 0
    %130 = vmatpush1.bf16.msra.mxu0 0
    %131 = vmatprep.subr.bf16.mxu0 %v115
    %132 = vmatpush1.bf16.msra.mxu0 %v112
    %133 = vmatprep.subr.bf16.mxu0 0
    %134 = vmatpush2.bf16.msra.mxu0 0
    %135 = vmatprep.subr.bf16.mxu0 0
    %136 = vmatpush2.bf16.msra.mxu0 0
    %137 = vmatprep.subr.bf16.mxu0 0
    %138 = vmatpush2.bf16.msra.mxu0 0
    %139 = vmatprep.subr.bf16.mxu0 0
    %140 = vmatpush2.bf16.msra.mxu0 0
    %141 = vmatprep.subr.bf16.mxu0 0
    %142 = vmatpush2.bf16.msra.mxu0 0
    %143 = vmatprep.subr.bf16.mxu0 0
    %144 = vmatpush2.bf16.msra.mxu0 0
    %145 = vmatprep.subr.bf16.mxu0 0
    %146 = vmatpush2.bf16.msra.mxu0 0
    %147 = vmatprep.subr.bf16.mxu0 0
    %148 = vmatpush2.bf16.msra.mxu0 0
    %149 = vmatprep.mubr.bf16.mxu0 0
    %150 = vmatmul.mubr.bf16.gmra.mxu0 %v105
    %v151 = vpop.f32.mrf.mxu0
    %v152 = vadd.f32 %v88, %v151
    %v153 = vpop.f32.mrf.mxu0
    %v154 = vadd.f32 %v92, %v153
    %v155 = vpop.f32.mrf.mxu0
    %v156 = vpop.f32.mrf.mxu0
    %157 = vdwg.mxu0
    %s158 = sld [smem:[#allocation3]]
    %vm159 = vcmp.gt.f32.partialorder %v152, 0.0
    %vm160 = vcmp.gt.f32.partialorder %v154, 0.0
    %v161 = vstv %s158
    %v162 = vmul.f32 %v161, %v152
    %v163 = vmul.f32 %v161, %v154
    %v164 = vsel %vm159, %v152, %v162
    %v165 = vsel %vm160, %v154, %v163
    %v166 = vpack.c.bf16 %v164, %v164
    %v167 = vpack.c.bf16 %v165, %v165
    %v168 = vld [vmem:[#allocation6] sm:$0xff]
    %v169 = vld [vmem:[#allocation6 + $0x8] sm:$0xff]
    %v170 = vld [vmem:[#allocation6 + $0x10] sm:$0xff]
    %v171 = vld [vmem:[#allocation6 + $0x18] sm:$0xff]
    %v172 = vld [vmem:[#allocation6 + $0x20] sm:$0xff]
    %v173 = vld [vmem:[#allocation6 + $0x28] sm:$0xff]
    %v174 = vld [vmem:[#allocation6 + $0x30] sm:$0xff]
    %v175 = vld [vmem:[#allocation6 + $0x38] sm:$0xff]
    %v176 = vld [vmem:[#allocation6 + $0x40] sm:$0xff]
    %v177 = vld [vmem:[#allocation6 + $0x48] sm:$0xff]
    %v178 = vld [vmem:[#allocation6 + $0x50] sm:$0xff]
    %v179 = vld [vmem:[#allocation6 + $0x58] sm:$0xff]
    %v180 = vld [vmem:[#allocation6 + $0x60] sm:$0xff]
    %v181 = vld [vmem:[#allocation6 + $0x68] sm:$0xff]
    %v182 = vld [vmem:[#allocation6 + $0x70] sm:$0xff]
    %v183 = vld [vmem:[#allocation6 + $0x78] sm:$0xff]
    %v184 = vld [vmem:[#allocation6 + $0x80] sm:$0xff]
    %v185 = vld [vmem:[#allocation6 + $0x88] sm:$0xff]
    %v186 = vld [vmem:[#allocation6 + $0x90] sm:$0xff]
    %v187 = vld [vmem:[#allocation6 + $0x98] sm:$0xff]
    %v188 = vld [vmem:[#allocation6 + $0xa0] sm:$0xff]
    %v189 = vld [vmem:[#allocation6 + $0xa8] sm:$0xff]
    %v190 = vld [vmem:[#allocation6 + $0xb0] sm:$0xff]
    %v191 = vld [vmem:[#allocation6 + $0xb8] sm:$0xff]
    %v192 = vld [vmem:[#allocation6 + $0xc0] sm:$0xff]
    %v193 = vld [vmem:[#allocation6 + $0xc8] sm:$0xff]
    %v194 = vld [vmem:[#allocation6 + $0xd0] sm:$0xff]
    %v195 = vld [vmem:[#allocation6 + $0xd8] sm:$0xff]
    %v196 = vld [vmem:[#allocation6 + $0xe0] sm:$0xff]
    %v197 = vld [vmem:[#allocation6 + $0xe8] sm:$0xff]
    %v198 = vld [vmem:[#allocation6 + $0xf0] sm:$0xff]
    %v199 = vld [vmem:[#allocation6 + $0xf8] sm:$0xff]
    %v200 = vld [vmem:[%s5] sm:$0x3]
    %v202 = vlaneseq
    %v203 = vshrl.u32 %v202, 7
    %v204 = vsub.s32 0, %v203
    %v205 = vrot.slane %v200, %v204
    %v206 = vlaneseq
    %v207 = vshrl.u32 %v206, 7
    %v208 = vsub.s32 1, %v207
    %v209 = vrot.slane %v200, %v208
    %v244 = vunpack.c.l.b16 %v168
    %v245 = vunpack.c.h.b16 %v168
    %v246 = vunpack.c.l.b16 %v169
    %v247 = vunpack.c.h.b16 %v169
    %v248 = vunpack.c.l.b16 %v170
    %v249 = vunpack.c.h.b16 %v170
    %v250 = vunpack.c.l.b16 %v171
    %v251 = vunpack.c.h.b16 %v171
    %v252 = vunpack.c.l.b16 %v172
    %v253 = vunpack.c.h.b16 %v172
    %v254 = vunpack.c.l.b16 %v173
    %v255 = vunpack.c.h.b16 %v173
    %v256 = vunpack.c.l.b16 %v174
    %v257 = vunpack.c.h.b16 %v174
    %v258 = vunpack.c.l.b16 %v175
    %v259 = vunpack.c.h.b16 %v175
    %v260 = vunpack.c.l.b16 %v176
    %v261 = vunpack.c.h.b16 %v176
    %v262 = vunpack.c.l.b16 %v177
    %v263 = vunpack.c.h.b16 %v177
    %v264 = vunpack.c.l.b16 %v178
    %v265 = vunpack.c.h.b16 %v178
    %v266 = vunpack.c.l.b16 %v179
    %v267 = vunpack.c.h.b16 %v179
    %v268 = vunpack.c.l.b16 %v180
    %v269 = vunpack.c.h.b16 %v180
    %v270 = vunpack.c.l.b16 %v181
    %v271 = vunpack.c.h.b16 %v181
    %v272 = vunpack.c.l.b16 %v182
    %v273 = vunpack.c.h.b16 %v182
    %v274 = vunpack.c.l.b16 %v183
    %v275 = vunpack.c.h.b16 %v183
    %v276 = vunpack.c.l.b16 %v184
    %v277 = vunpack.c.h.b16 %v184
    %v278 = vunpack.c.l.b16 %v185
    %v279 = vunpack.c.h.b16 %v185
    %v280 = vunpack.c.l.b16 %v186
    %v281 = vunpack.c.h.b16 %v186
    %v282 = vunpack.c.l.b16 %v187
    %v283 = vunpack.c.h.b16 %v187
    %v284 = vunpack.c.l.b16 %v188
    %v285 = vunpack.c.h.b16 %v188
    %v286 = vunpack.c.l.b16 %v189
    %v287 = vunpack.c.h.b16 %v189
    %v288 = vunpack.c.l.b16 %v190
    %v289 = vunpack.c.h.b16 %v190
    %v290 = vunpack.c.l.b16 %v191
    %v291 = vunpack.c.h.b16 %v191
    %v292 = vunpack.c.l.b16 %v192
    %v293 = vunpack.c.h.b16 %v192
    %v294 = vunpack.c.l.b16 %v193
    %v295 = vunpack.c.h.b16 %v193
    %v296 = vunpack.c.l.b16 %v194
    %v297 = vunpack.c.h.b16 %v194
    %v298 = vunpack.c.l.b16 %v195
    %v299 = vunpack.c.h.b16 %v195
    %v300 = vunpack.c.l.b16 %v196
    %v301 = vunpack.c.h.b16 %v196
    %v302 = vunpack.c.l.b16 %v197
    %v303 = vunpack.c.h.b16 %v197
    %v304 = vunpack.c.l.b16 %v198
    %v305 = vunpack.c.h.b16 %v198
    %v306 = vunpack.c.l.b16 %v199
    %v307 = vunpack.c.h.b16 %v199
    %v308 = vpack.c.b16 %v246, %v244
    %v309 = vpack.c.b16 %v247, %v245
    %v310 = vpack.c.b16 %v250, %v248
    %v311 = vpack.c.b16 %v251, %v249
    %v312 = vpack.c.b16 %v254, %v252
    %v313 = vpack.c.b16 %v255, %v253
    %v314 = vpack.c.b16 %v258, %v256
    %v315 = vpack.c.b16 %v259, %v257
    %v316 = vpack.c.b16 %v262, %v260
    %v317 = vpack.c.b16 %v263, %v261
    %v318 = vpack.c.b16 %v266, %v264
    %v319 = vpack.c.b16 %v267, %v265
    %v320 = vpack.c.b16 %v270, %v268
    %v321 = vpack.c.b16 %v271, %v269
    %v322 = vpack.c.b16 %v274, %v272
    %v323 = vpack.c.b16 %v275, %v273
    %v324 = vpack.c.b16 %v278, %v276
    %v325 = vpack.c.b16 %v279, %v277
    %v326 = vpack.c.b16 %v282, %v280
    %v327 = vpack.c.b16 %v283, %v281
    %v328 = vpack.c.b16 %v286, %v284
    %v329 = vpack.c.b16 %v287, %v285
    %v330 = vpack.c.b16 %v290, %v288
    %v331 = vpack.c.b16 %v291, %v289
    %v332 = vpack.c.b16 %v294, %v292
    %v333 = vpack.c.b16 %v295, %v293
    %v334 = vpack.c.b16 %v298, %v296
    %v335 = vpack.c.b16 %v299, %v297
    %v336 = vpack.c.b16 %v302, %v300
    %v337 = vpack.c.b16 %v303, %v301
    %v338 = vpack.c.b16 %v306, %v304
    %v339 = vpack.c.b16 %v307, %v305
    %372 = vmatprep.subr.bf16.mxu0 %v323
    %373 = vmatpush1.bf16.msra.mxu0 %v322
    %374 = vmatprep.subr.bf16.mxu0 %v321
    %375 = vmatpush1.bf16.msra.mxu0 %v320
    %376 = vmatprep.subr.bf16.mxu0 %v319
    %377 = vmatpush1.bf16.msra.mxu0 %v318
    %378 = vmatprep.subr.bf16.mxu0 %v317
    %379 = vmatpush1.bf16.msra.mxu0 %v316
    %380 = vmatprep.subr.bf16.mxu0 %v315
    %381 = vmatpush1.bf16.msra.mxu0 %v314
    %382 = vmatprep.subr.bf16.mxu0 %v313
    %383 = vmatpush1.bf16.msra.mxu0 %v312
    %384 = vmatprep.subr.bf16.mxu0 %v311
    %385 = vmatpush1.bf16.msra.mxu0 %v310
    %386 = vmatprep.subr.bf16.mxu0 %v309
    %387 = vmatpush1.bf16.msra.mxu0 %v308
    %388 = vmatprep.subr.bf16.mxu0 %v339
    %389 = vmatpush2.bf16.msra.mxu0 %v338
    %390 = vmatprep.subr.bf16.mxu0 %v337
    %391 = vmatpush2.bf16.msra.mxu0 %v336
    %392 = vmatprep.subr.bf16.mxu0 %v335
    %393 = vmatpush2.bf16.msra.mxu0 %v334
    %394 = vmatprep.subr.bf16.mxu0 %v333
    %395 = vmatpush2.bf16.msra.mxu0 %v332
    %396 = vmatprep.subr.bf16.mxu0 %v331
    %397 = vmatpush2.bf16.msra.mxu0 %v330
    %398 = vmatprep.subr.bf16.mxu0 %v329
    %399 = vmatpush2.bf16.msra.mxu0 %v328
    %400 = vmatprep.subr.bf16.mxu0 %v327
    %401 = vmatpush2.bf16.msra.mxu0 %v326
    %402 = vmatprep.subr.bf16.mxu0 %v325
    %403 = vmatpush2.bf16.msra.mxu0 %v324
    %404 = vmatprep.mubr.bf16.mxu0 %v167
    %405 = vmatmul.mubr.bf16.gmra.mxu0 %v166
    %v406 = vpop.f32.mrf.mxu0
    %v407 = vadd.f32 %v205, %v406
    %v408 = vpop.f32.mrf.mxu0
    %v409 = vadd.f32 %v209, %v408
    %v410 = vpop.f32.mrf.mxu0
    %v411 = vpop.f32.mrf.mxu0
    %412 = vdwg.mxu0
    %s413 = sld [smem:[#allocation3 + $0x1]]
    %vm414 = vcmp.gt.f32.partialorder %v407, 0.0
    %vm415 = vcmp.gt.f32.partialorder %v409, 0.0
    %v416 = vstv %s413
    %v417 = vmul.f32 %v416, %v407
    %v418 = vmul.f32 %v416, %v409
    %v419 = vsel %vm414, %v407, %v417
    %v420 = vsel %vm415, %v409, %v418
    %v421 = vpack.c.bf16 %v419, %v419
    %v422 = vpack.c.bf16 %v420, %v420
    %v423 = vld [vmem:[#allocation7] sm:$0xff]
    %v424 = vld [vmem:[#allocation7 + $0x8] sm:$0xff]
    %v425 = vld [vmem:[#allocation7 + $0x10] sm:$0xff]
    %v426 = vld [vmem:[#allocation7 + $0x18] sm:$0xff]
    %v427 = vld [vmem:[#allocation7 + $0x20] sm:$0xff]
    %v428 = vld [vmem:[#allocation7 + $0x28] sm:$0xff]
    %v429 = vld [vmem:[#allocation7 + $0x30] sm:$0xff]
    %v430 = vld [vmem:[#allocation7 + $0x38] sm:$0xff]
    %v431 = vld [vmem:[#allocation7 + $0x40] sm:$0xff]
    %v432 = vld [vmem:[#allocation7 + $0x48] sm:$0xff]
    %v433 = vld [vmem:[#allocation7 + $0x50] sm:$0xff]
    %v434 = vld [vmem:[#allocation7 + $0x58] sm:$0xff]
    %v435 = vld [vmem:[#allocation7 + $0x60] sm:$0xff]
    %v436 = vld [vmem:[#allocation7 + $0x68] sm:$0xff]
    %v437 = vld [vmem:[#allocation7 + $0x70] sm:$0xff]
    %v438 = vld [vmem:[#allocation7 + $0x78] sm:$0xff]
    %v439 = vld [vmem:[#allocation7 + $0x80] sm:$0xff]
    %v440 = vld [vmem:[#allocation7 + $0x88] sm:$0xff]
    %v441 = vld [vmem:[#allocation7 + $0x90] sm:$0xff]
    %v442 = vld [vmem:[#allocation7 + $0x98] sm:$0xff]
    %v443 = vld [vmem:[#allocation7 + $0xa0] sm:$0xff]
    %v444 = vld [vmem:[#allocation7 + $0xa8] sm:$0xff]
    %v445 = vld [vmem:[#allocation7 + $0xb0] sm:$0xff]
    %v446 = vld [vmem:[#allocation7 + $0xb8] sm:$0xff]
    %v447 = vld [vmem:[#allocation7 + $0xc0] sm:$0xff]
    %v448 = vld [vmem:[#allocation7 + $0xc8] sm:$0xff]
    %v449 = vld [vmem:[#allocation7 + $0xd0] sm:$0xff]
    %v450 = vld [vmem:[#allocation7 + $0xd8] sm:$0xff]
    %v451 = vld [vmem:[#allocation7 + $0xe0] sm:$0xff]
    %v452 = vld [vmem:[#allocation7 + $0xe8] sm:$0xff]
    %v453 = vld [vmem:[#allocation7 + $0xf0] sm:$0xff]
    %v454 = vld [vmem:[#allocation7 + $0xf8] sm:$0xff]
    %v455 = vld [vmem:[%s7] sm:$0x3]
    %v457 = vlaneseq
    %v458 = vshrl.u32 %v457, 7
    %v459 = vsub.s32 0, %v458
    %v460 = vrot.slane %v455, %v459
    %v461 = vlaneseq
    %v462 = vshrl.u32 %v461, 7
    %v463 = vsub.s32 1, %v462
    %v464 = vrot.slane %v455, %v463
    %v499 = vunpack.c.l.b16 %v423
    %v500 = vunpack.c.h.b16 %v423
    %v501 = vunpack.c.l.b16 %v424
    %v502 = vunpack.c.h.b16 %v424
    %v503 = vunpack.c.l.b16 %v425
    %v504 = vunpack.c.h.b16 %v425
    %v505 = vunpack.c.l.b16 %v426
    %v506 = vunpack.c.h.b16 %v426
    %v507 = vunpack.c.l.b16 %v427
    %v508 = vunpack.c.h.b16 %v427
    %v509 = vunpack.c.l.b16 %v428
    %v510 = vunpack.c.h.b16 %v428
    %v511 = vunpack.c.l.b16 %v429
    %v512 = vunpack.c.h.b16 %v429
    %v513 = vunpack.c.l.b16 %v430
    %v514 = vunpack.c.h.b16 %v430
    %v515 = vunpack.c.l.b16 %v431
    %v516 = vunpack.c.h.b16 %v431
    %v517 = vunpack.c.l.b16 %v432
    %v518 = vunpack.c.h.b16 %v432
    %v519 = vunpack.c.l.b16 %v433
    %v520 = vunpack.c.h.b16 %v433
    %v521 = vunpack.c.l.b16 %v434
    %v522 = vunpack.c.h.b16 %v434
    %v523 = vunpack.c.l.b16 %v435
    %v524 = vunpack.c.h.b16 %v435
    %v525 = vunpack.c.l.b16 %v436
    %v526 = vunpack.c.h.b16 %v436
    %v527 = vunpack.c.l.b16 %v437
    %v528 = vunpack.c.h.b16 %v437
    %v529 = vunpack.c.l.b16 %v438
    %v530 = vunpack.c.h.b16 %v438
    %v531 = vunpack.c.l.b16 %v439
    %v532 = vunpack.c.h.b16 %v439
    %v533 = vunpack.c.l.b16 %v440
    %v534 = vunpack.c.h.b16 %v440
    %v535 = vunpack.c.l.b16 %v441
    %v536 = vunpack.c.h.b16 %v441
    %v537 = vunpack.c.l.b16 %v442
    %v538 = vunpack.c.h.b16 %v442
    %v539 = vunpack.c.l.b16 %v443
    %v540 = vunpack.c.h.b16 %v443
    %v541 = vunpack.c.l.b16 %v444
    %v542 = vunpack.c.h.b16 %v444
    %v543 = vunpack.c.l.b16 %v445
    %v544 = vunpack.c.h.b16 %v445
    %v545 = vunpack.c.l.b16 %v446
    %v546 = vunpack.c.h.b16 %v446
    %v547 = vunpack.c.l.b16 %v447
    %v548 = vunpack.c.h.b16 %v447
    %v549 = vunpack.c.l.b16 %v448
    %v550 = vunpack.c.h.b16 %v448
    %v551 = vunpack.c.l.b16 %v449
    %v552 = vunpack.c.h.b16 %v449
    %v553 = vunpack.c.l.b16 %v450
    %v554 = vunpack.c.h.b16 %v450
    %v555 = vunpack.c.l.b16 %v451
    %v556 = vunpack.c.h.b16 %v451
    %v557 = vunpack.c.l.b16 %v452
    %v558 = vunpack.c.h.b16 %v452
    %v559 = vunpack.c.l.b16 %v453
    %v560 = vunpack.c.h.b16 %v453
    %v561 = vunpack.c.l.b16 %v454
    %v562 = vunpack.c.h.b16 %v454
    %v563 = vpack.c.b16 %v501, %v499
    %v564 = vpack.c.b16 %v502, %v500
    %v565 = vpack.c.b16 %v505, %v503
    %v566 = vpack.c.b16 %v506, %v504
    %v567 = vpack.c.b16 %v509, %v507
    %v568 = vpack.c.b16 %v510, %v508
    %v569 = vpack.c.b16 %v513, %v511
    %v570 = vpack.c.b16 %v514, %v512
    %v571 = vpack.c.b16 %v517, %v515
    %v572 = vpack.c.b16 %v518, %v516
    %v573 = vpack.c.b16 %v521, %v519
    %v574 = vpack.c.b16 %v522, %v520
    %v575 = vpack.c.b16 %v525, %v523
    %v576 = vpack.c.b16 %v526, %v524
    %v577 = vpack.c.b16 %v529, %v527
    %v578 = vpack.c.b16 %v530, %v528
    %v579 = vpack.c.b16 %v533, %v531
    %v580 = vpack.c.b16 %v534, %v532
    %v581 = vpack.c.b16 %v537, %v535
    %v582 = vpack.c.b16 %v538, %v536
    %v583 = vpack.c.b16 %v541, %v539
    %v584 = vpack.c.b16 %v542, %v540
    %v585 = vpack.c.b16 %v545, %v543
    %v586 = vpack.c.b16 %v546, %v544
    %v587 = vpack.c.b16 %v549, %v547
    %v588 = vpack.c.b16 %v550, %v548
    %v589 = vpack.c.b16 %v553, %v551
    %v590 = vpack.c.b16 %v554, %v552
    %v591 = vpack.c.b16 %v557, %v555
    %v592 = vpack.c.b16 %v558, %v556
    %v593 = vpack.c.b16 %v561, %v559
    %v594 = vpack.c.b16 %v562, %v560
    %627 = vmatprep.subr.bf16.mxu0 %v578
    %628 = vmatpush1.bf16.msra.mxu0 %v577
    %629 = vmatprep.subr.bf16.mxu0 %v576
    %630 = vmatpush1.bf16.msra.mxu0 %v575
    %631 = vmatprep.subr.bf16.mxu0 %v574
    %632 = vmatpush1.bf16.msra.mxu0 %v573
    %633 = vmatprep.subr.bf16.mxu0 %v572
    %634 = vmatpush1.bf16.msra.mxu0 %v571
    %635 = vmatprep.subr.bf16.mxu0 %v570
    %636 = vmatpush1.bf16.msra.mxu0 %v569
    %637 = vmatprep.subr.bf16.mxu0 %v568
    %638 = vmatpush1.bf16.msra.mxu0 %v567
    %639 = vmatprep.subr.bf16.mxu0 %v566
    %640 = vmatpush1.bf16.msra.mxu0 %v565
    %641 = vmatprep.subr.bf16.mxu0 %v564
    %642 = vmatpush1.bf16.msra.mxu0 %v563
    %643 = vmatprep.subr.bf16.mxu0 %v594
    %644 = vmatpush2.bf16.msra.mxu0 %v593
    %645 = vmatprep.subr.bf16.mxu0 %v592
    %646 = vmatpush2.bf16.msra.mxu0 %v591
    %647 = vmatprep.subr.bf16.mxu0 %v590
    %648 = vmatpush2.bf16.msra.mxu0 %v589
    %649 = vmatprep.subr.bf16.mxu0 %v588
    %650 = vmatpush2.bf16.msra.mxu0 %v587
    %651 = vmatprep.subr.bf16.mxu0 %v586
    %652 = vmatpush2.bf16.msra.mxu0 %v585
    %653 = vmatprep.subr.bf16.mxu0 %v584
    %654 = vmatpush2.bf16.msra.mxu0 %v583
    %655 = vmatprep.subr.bf16.mxu0 %v582
    %656 = vmatpush2.bf16.msra.mxu0 %v581
    %657 = vmatprep.subr.bf16.mxu0 %v580
    %658 = vmatpush2.bf16.msra.mxu0 %v579
    %659 = vmatprep.mubr.bf16.mxu0 %v422
    %660 = vmatmul.mubr.bf16.gmra.mxu0 %v421
    %v661 = vpop.f32.mrf.mxu0
    %v662 = vadd.f32 %v460, %v661
    %v663 = vpop.f32.mrf.mxu0
    %v664 = vadd.f32 %v464, %v663
    %v665 = vpop.f32.mrf.mxu0
    %v666 = vpop.f32.mrf.mxu0
    %667 = vdwg.mxu0
    %s668 = sld [smem:[#allocation3 + $0x2]]
    %vm669 = vcmp.gt.f32.partialorder %v662, 0.0
    %vm670 = vcmp.gt.f32.partialorder %v664, 0.0
    %v671 = vstv %s668
    %v672 = vmul.f32 %v671, %v662
    %v673 = vmul.f32 %v671, %v664
    %v674 = vsel %vm669, %v662, %v672
    %v675 = vsel %vm670, %v664, %v673
    %v676 = vpack.c.bf16 %v674, %v674
    %v677 = vpack.c.bf16 %v675, %v675
    %v678 = vld [vmem:[%s8] sm:$0xf]
    %v679 = vld [vmem:[%s8 + $0x4] sm:$0xf]
    %v680 = vld [vmem:[%s8 + $0x8] sm:$0xf]
    %v681 = vld [vmem:[%s8 + $0xc] sm:$0xf]
    %v682 = vld [vmem:[%s8 + $0x10] sm:$0xf]
    %v683 = vld [vmem:[%s8 + $0x14] sm:$0xf]
    %v684 = vld [vmem:[%s8 + $0x18] sm:$0xf]
    %v685 = vld [vmem:[%s8 + $0x1c] sm:$0xf]
    %v686 = vld [vmem:[%s8 + $0x20] sm:$0xf]
    %v687 = vld [vmem:[%s8 + $0x24] sm:$0xf]
    %v688 = vld [vmem:[%s8 + $0x28] sm:$0xf]
    %v689 = vld [vmem:[%s8 + $0x2c] sm:$0xf]
    %v690 = vld [vmem:[%s8 + $0x30] sm:$0xf]
    %v691 = vld [vmem:[%s8 + $0x34] sm:$0xf]
    %v692 = vld [vmem:[%s8 + $0x38] sm:$0xf]
    %v693 = vld [vmem:[%s8 + $0x3c] sm:$0xf]
    %v694 = vld [vmem:[%s8 + $0x40] sm:$0xf]
    %v695 = vld [vmem:[%s8 + $0x44] sm:$0xf]
    %v696 = vld [vmem:[%s8 + $0x48] sm:$0xf]
    %v697 = vld [vmem:[%s8 + $0x4c] sm:$0xf]
    %v698 = vld [vmem:[%s8 + $0x50] sm:$0xf]
    %v699 = vld [vmem:[%s8 + $0x54] sm:$0xf]
    %v700 = vld [vmem:[%s8 + $0x58] sm:$0xf]
    %v701 = vld [vmem:[%s8 + $0x5c] sm:$0xf]
    %v702 = vld [vmem:[%s8 + $0x60] sm:$0xf]
    %v703 = vld [vmem:[%s8 + $0x64] sm:$0xf]
    %v704 = vld [vmem:[%s8 + $0x68] sm:$0xf]
    %v705 = vld [vmem:[%s8 + $0x6c] sm:$0xf]
    %v706 = vld [vmem:[%s8 + $0x70] sm:$0xf]
    %v707 = vld [vmem:[%s8 + $0x74] sm:$0xf]
    %v708 = vld [vmem:[%s8 + $0x78] sm:$0xf]
    %v709 = vld [vmem:[%s8 + $0x7c] sm:$0xf]
    %v710 = vld [vmem:[#allocation2] sm:$0x1]
    %v712 = vlaneseq
    %v713 = vshrl.u32 %v712, 7
    %v714 = vsub.s32 0, %v713
    %v715 = vrot.slane %v710, %v714
    %v749 = vunpack.c.l.b16 %v678
    %v750 = vunpack.c.l.b16 %v679
    %v751 = vunpack.c.l.b16 %v680
    %v752 = vunpack.c.l.b16 %v681
    %v753 = vunpack.c.l.b16 %v682
    %v754 = vunpack.c.l.b16 %v683
    %v755 = vunpack.c.l.b16 %v684
    %v756 = vunpack.c.l.b16 %v685
    %v757 = vunpack.c.l.b16 %v686
    %v758 = vunpack.c.l.b16 %v687
    %v759 = vunpack.c.l.b16 %v688
    %v760 = vunpack.c.l.b16 %v689
    %v761 = vunpack.c.l.b16 %v690
    %v762 = vunpack.c.l.b16 %v691
    %v763 = vunpack.c.l.b16 %v692
    %v764 = vunpack.c.l.b16 %v693
    %v765 = vunpack.c.l.b16 %v694
    %v766 = vunpack.c.l.b16 %v695
    %v767 = vunpack.c.l.b16 %v696
    %v768 = vunpack.c.l.b16 %v697
    %v769 = vunpack.c.l.b16 %v698
    %v770 = vunpack.c.l.b16 %v699
    %v771 = vunpack.c.l.b16 %v700
    %v772 = vunpack.c.l.b16 %v701
    %v773 = vunpack.c.l.b16 %v702
    %v774 = vunpack.c.l.b16 %v703
    %v775 = vunpack.c.l.b16 %v704
    %v776 = vunpack.c.l.b16 %v705
    %v777 = vunpack.c.l.b16 %v706
    %v778 = vunpack.c.l.b16 %v707
    %v779 = vunpack.c.l.b16 %v708
    %v780 = vunpack.c.l.b16 %v709
    %v781 = vpack.c.b16 %v750, %v749
    %v782 = vpack.c.b16 %v752, %v751
    %v783 = vpack.c.b16 %v754, %v753
    %v784 = vpack.c.b16 %v756, %v755
    %v785 = vpack.c.b16 %v758, %v757
    %v786 = vpack.c.b16 %v760, %v759
    %v787 = vpack.c.b16 %v762, %v761
    %v788 = vpack.c.b16 %v764, %v763
    %v789 = vpack.c.b16 %v766, %v765
    %v790 = vpack.c.b16 %v768, %v767
    %v791 = vpack.c.b16 %v770, %v769
    %v792 = vpack.c.b16 %v772, %v771
    %v793 = vpack.c.b16 %v774, %v773
    %v794 = vpack.c.b16 %v776, %v775
    %v795 = vpack.c.b16 %v778, %v777
    %v796 = vpack.c.b16 %v780, %v779
    %813 = vmatprep.subr.bf16.mxu0 0
    %814 = vmatpush1.bf16.msra.mxu0 %v788
    %815 = vmatprep.subr.bf16.mxu0 0
    %816 = vmatpush1.bf16.msra.mxu0 %v787
    %817 = vmatprep.subr.bf16.mxu0 0
    %818 = vmatpush1.bf16.msra.mxu0 %v786
    %819 = vmatprep.subr.bf16.mxu0 0
    %820 = vmatpush1.bf16.msra.mxu0 %v785
    %821 = vmatprep.subr.bf16.mxu0 0
    %822 = vmatpush1.bf16.msra.mxu0 %v784
    %823 = vmatprep.subr.bf16.mxu0 0
    %824 = vmatpush1.bf16.msra.mxu0 %v783
    %825 = vmatprep.subr.bf16.mxu0 0
    %826 = vmatpush1.bf16.msra.mxu0 %v782
    %827 = vmatprep.subr.bf16.mxu0 0
    %828 = vmatpush1.bf16.msra.mxu0 %v781
    %829 = vmatprep.subr.bf16.mxu0 0
    %830 = vmatpush2.bf16.msra.mxu0 %v796
    %831 = vmatprep.subr.bf16.mxu0 0
    %832 = vmatpush2.bf16.msra.mxu0 %v795
    %833 = vmatprep.subr.bf16.mxu0 0
    %834 = vmatpush2.bf16.msra.mxu0 %v794
    %835 = vmatprep.subr.bf16.mxu0 0
    %836 = vmatpush2.bf16.msra.mxu0 %v793
    %837 = vmatprep.subr.bf16.mxu0 0
    %838 = vmatpush2.bf16.msra.mxu0 %v792
    %839 = vmatprep.subr.bf16.mxu0 0
    %840 = vmatpush2.bf16.msra.mxu0 %v791
    %841 = vmatprep.subr.bf16.mxu0 0
    %842 = vmatpush2.bf16.msra.mxu0 %v790
    %843 = vmatprep.subr.bf16.mxu0 0
    %844 = vmatpush2.bf16.msra.mxu0 %v789
    %845 = vmatprep.mubr.bf16.mxu0 %v677
    %846 = vmatmul.mubr.bf16.gmra.mxu0 %v676
    %v847 = vpop.f32.mrf.mxu0
    %v848 = vadd.f32 %v715, %v847
    %v849 = vpop.f32.mrf.mxu0
    %v850 = vpop.f32.mrf.mxu0
    %v851 = vpop.f32.mrf.mxu0
    %852 = vdwg.mxu0
    %vm853 = vcmask 7168
    %854 = vst.msk [vmem:[%s10] sm:$0xff] %vm853, %v848
    // Predicated region
    $region54: #{critic_forward.1} parent=1 // pred_check
      _
    $region55: #{critic_forward.1} parent=1 // pred_check_branch
      %856 = sbr.rel (0) target = $region57
    $region56: #{critic_forward.1} parent=1 // pred_region
      _
    $region57: #{critic_forward.1} parent=1 // pred_fallthru
      _
    // Predicated region
    $region58: #{critic_forward.1} parent=1 // pred_check
      _
    $region59: #{critic_forward.1} parent=1 // pred_check_branch
      %858 = sbr.rel (0) target = $region61
    $region60: #{critic_forward.1} parent=1 // pred_region
      _
    $region61: #{critic_forward.1} parent=1 // pred_fallthru
      _
    %859 = vsyncpa [#allocation4], 1
    %860 = vsyncpa [#allocation8], 1
    %861 = vsyncpa [#allocation5], 1

</llo_original>
